<compile_context>
chip_gen: v6e
topology: v6e:2x2x1
jax: 0.10.0
libtpu: 0.0.40
codegen_flags: <defaults>
</compile_context>

<pallas_src>
import functools
import math

import jax
import jax.numpy as jnp
from jax.experimental import pallas as pl
from jax.experimental.pallas import tpu as pltpu

EPS = 1e-6
# 48 MiB scoped VMEM: well above the 16/32 MiB defaults, still safe on v7x (64 MiB).
_VMEM_LIMIT_BYTES = 48 * 1024 * 1024


def _compiler_params(*semantics):
    return pltpu.CompilerParams(
        dimension_semantics=semantics, vmem_limit_bytes=_VMEM_LIMIT_BYTES
    )


def _block(dim, target, multiple):
    """Largest tile <= target that divides `dim` and is a multiple of `multiple`;
    falls back to the full dimension (always a legal Pallas block shape)."""
    t = min(target, dim)
    t -= t % multiple
    while t >= multiple:
        if dim % t == 0:
            return t
        t -= multiple
    return dim


def _keep_threshold(p):
    # keep an element iff uniform uint32 bits >= p * 2**32   (P(keep) = 1 - p)
    return min(int(p * float(2**32)), 2**32 - 1)


# ---------------------------------------------------------------------------
# Kernel 1: fused LayerNorm + Linear (+ ReLU) (+ dropout on the output)
#   out = drop(relu(LN(x) @ W + b))    — LN output never materialized in HBM.
# ---------------------------------------------------------------------------
def _ln_linear_kernel(*refs, features, relu, keep_threshold, keep_scale):
    has_dropout = keep_threshold is not None
    if has_dropout:
        x_ref, g_ref, beta_ref, w_ref, wb_ref, bits_ref, o_ref = refs
    else:
        x_ref, g_ref, beta_ref, w_ref, wb_ref, o_ref = refs

    x = x_ref[...].astype(jnp.float32)                       # (bm, K)
    mean = jnp.mean(x, axis=-1, keepdims=True)
    c = x - mean
    # torch.std default = unbiased estimator (ddof = 1)
    var = jnp.sum(c * c, axis=-1, keepdims=True) * (1.0 / (features - 1))
    inv = 1.0 / (jnp.sqrt(var) + EPS)                        # exact recip, (bm,1) only
    normed = g_ref[...].astype(jnp.float32) * (c * inv) + beta_ref[...].astype(jnp.float32)

    y = jnp.dot(normed, w_ref[...].astype(jnp.float32),
                preferred_element_type=jnp.float32)
    y = y + wb_ref[...].astype(jnp.float32)
    if relu:
        y = jnp.maximum(y, 0.0)
    if has_dropout:
        keep = bits_ref[...] >= jnp.uint32(keep_threshold)
        y = jnp.where(keep, y * keep_scale, 0.0)
    o_ref[...] = y.astype(o_ref.dtype)


def ln_linear(x2d, gamma, beta, w, bias, *, relu=False, dropout_p=0.0,
              drop_bits=None, block_m=256, block_n=512):
    R, K = x2d.shape
    N = w.shape[1]
    bm = _block(R, block_m, 8)
    bn = _block(N, block_n, 128)
    grid = (R // bm, N // bn)
    has_dropout = dropout_p > 0.0

    in_specs = [
        pl.BlockSpec((bm, K), lambda i, j: (i, 0)),   # x rows (full K: LN needs whole row)
        pl.BlockSpec((1, K), lambda i, j: (0, 0)),    # LN alpha
        pl.BlockSpec((1, K), lambda i, j: (0, 0)),    # LN bias
        pl.BlockSpec((K, bn), lambda i, j: (0, j)),   # W
        pl.BlockSpec((1, bn), lambda i, j: (0, j)),   # linear bias
    ]
    inputs = [x2d, gamma.reshape(1, K), beta.reshape(1, K), w, bias.reshape(1, N)]
    if has_dropout:
        in_specs.append(pl.BlockSpec((bm, bn), lambda i, j: (i, j)))
        inputs.append(drop_bits)

    kernel = functools.partial(
        _ln_linear_kernel, features=K, relu=relu,
        keep_threshold=_keep_threshold(dropout_p) if has_dropout else None,
        keep_scale=1.0 / (1.0 - dropout_p) if has_dropout else 1.0)

    return pl.pallas_call(
        kernel,
        out_shape=jax.ShapeDtypeStruct((R, N), x2d.dtype),
        grid_spec=pltpu.PrefetchScalarGridSpec(
            num_scalar_prefetch=0, grid=grid,
            in_specs=in_specs,
            out_specs=pl.BlockSpec((bm, bn), lambda i, j: (i, j))),
        compiler_params=_compiler_params("parallel", "parallel"),
    )(*inputs)


# ---------------------------------------------------------------------------
# Kernel 2: K-tiled matmul with fused epilogue:
#   out = [residual +] drop(x @ W + b)
# ---------------------------------------------------------------------------
def _linear_kernel(*refs, keep_threshold, keep_scale, has_residual):
    has_dropout = keep_threshold is not None
    x_ref, w_ref, b_ref = refs[0], refs[1], refs[2]
    idx = 3
    bits_ref = res_ref = None
    if has_dropout:
        bits_ref = refs[idx]; idx += 1
    if has_residual:
        res_ref = refs[idx]; idx += 1
    o_ref, acc_ref = refs[idx], refs[idx + 1]

    kstep = pl.program_id(2)

    @pl.when(kstep == 0)
    def _():
        acc_ref[...] = jnp.zeros_like(acc_ref)

    acc_ref[...] += jnp.dot(x_ref[...].astype(jnp.float32),
                            w_ref[...].astype(jnp.float32),
                            preferred_element_type=jnp.float32)

    @pl.when(kstep == pl.num_programs(2) - 1)
    def _():
        y = acc_ref[...] + b_ref[...].astype(jnp.float32)
        if has_dropout:
            keep = bits_ref[...] >= jnp.uint32(keep_threshold)
            y = jnp.where(keep, y * keep_scale, 0.0)
        if has_residual:
            y = res_ref[...].astype(jnp.float32) + y
        o_ref[...] = y.astype(o_ref.dtype)


def linear(x2d, w, bias, *, residual=None, dropout_p=0.0, drop_bits=None,
           block_m=256, block_n=512, block_k=512):
    R, K = x2d.shape
    N = w.shape[1]
    bm = _block(R, block_m, 8)
    bn = _block(N, block_n, 128)
    bk = _block(K, block_k, 128)
    grid = (R // bm, N // bn, K // bk)
    has_dropout = dropout_p > 0.0
    has_residual = residual is not None

    in_specs = [
        pl.BlockSpec((bm, bk), lambda i, j, k: (i, k)),
        pl.BlockSpec((bk, bn), lambda i, j, k: (k, j)),
        pl.BlockSpec((1, bn), lambda i, j, k: (0, j)),
    ]
    inputs = [x2d, w, bias.reshape(1, N)]
    if has_dropout:
        in_specs.append(pl.BlockSpec((bm, bn), lambda i, j, k: (i, j)))
        inputs.append(drop_bits)
    if has_residual:
        in_specs.append(pl.BlockSpec((bm, bn), lambda i, j, k: (i, j)))
        inputs.append(residual)

    kernel = functools.partial(
        _linear_kernel,
        keep_threshold=_keep_threshold(dropout_p) if has_dropout else None,
        keep_scale=1.0 / (1.0 - dropout_p) if has_dropout else 1.0,
        has_residual=has_residual)

    return pl.pallas_call(
        kernel,
        out_shape=jax.ShapeDtypeStruct((R, N), x2d.dtype),
        grid_spec=pltpu.PrefetchScalarGridSpec(
            num_scalar_prefetch=0, grid=grid,
            in_specs=in_specs,
            out_specs=pl.BlockSpec((bm, bn), lambda i, j, k: (i, j)),
            scratch_shapes=[pltpu.VMEM((bm, bn), jnp.float32)]),
        compiler_params=_compiler_params("parallel", "parallel", "arbitrary"),
    )(*inputs)


# ---------------------------------------------------------------------------
# Kernel 3: scaled-dot-product attention per (batch, head) grid step.
#   softmax(q k^T / sqrt(dk), mask==0 -> -1e9), dropout on probs, @ v
# TODO(synk): for long sequences replace the whole-(S,S) score tile with a
# flash-attention (online-softmax) KV tiling; fine for the small demo shapes.
# ---------------------------------------------------------------------------
def _attention_kernel(*refs, scale, keep_threshold, keep_scale, has_mask):
    has_dropout = keep_threshold is not None
    q_ref, k_ref, v_ref = refs[0], refs[1], refs[2]
    idx = 3
    mask_ref = bits_ref = None
    if has_mask:
        mask_ref = refs[idx]; idx += 1
    if has_dropout:
        bits_ref = refs[idx]; idx += 1
    o_ref = refs[idx]

    q = q_ref[...].astype(jnp.float32)            # (S, dk)
    kmat = k_ref[...].astype(jnp.float32)         # (S, dk)
    v = v_ref[...].astype(jnp.float32)            # (S, dk)

    # q @ k^T without materializing the transpose
    s = jax.lax.dot_general(q, kmat, (((1,), (1,)), ((), ())),
                            preferred_element_type=jnp.float32) * scale
    if has_mask:
        s = jnp.where(mask_ref[...] == 0, -1e9, s)
    s = s - jnp.max(s, axis=-1, keepdims=True)
    p = jnp.exp(s)
    p = p * (1.0 / jnp.sum(p, axis=-1, keepdims=True))
    if has_dropout:
        keep = bits_ref[...] >= jnp.uint32(keep_threshold)
        p = jnp.where(keep, p * keep_scale, 0.0)
    o_ref[...] = jnp.dot(p, v, preferred_element_type=jnp.float32).astype(o_ref.dtype)


def mha_attention(q, k, v, mask, *, dropout_p=0.0, drop_bits=None):
    B, H, S, dk = q.shape
    has_dropout = dropout_p > 0.0
    has_mask = mask is not None

    in_specs = [
        pl.BlockSpec((None, None, S, dk), lambda b, h: (b, h, 0, 0)),
        pl.BlockSpec((None, None, S, dk), lambda b, h: (b, h, 0, 0)),
        pl.BlockSpec((None, None, S, dk), lambda b, h: (b, h, 0, 0)),
    ]
    inputs = [q, k, v]
    if has_mask:
        in_specs.append(pl.BlockSpec((None, None, S, S), lambda b, h: (b, 0, 0, 0)))
        inputs.append(mask)
    if has_dropout:
        in_specs.append(pl.BlockSpec((None, None, S, S), lambda b, h: (b, h, 0, 0)))
        inputs.append(drop_bits)

    kernel = functools.partial(
        _attention_kernel, scale=1.0 / math.sqrt(dk),
        keep_threshold=_keep_threshold(dropout_p) if has_dropout else None,
        keep_scale=1.0 / (1.0 - dropout_p) if has_dropout else 1.0,
        has_mask=has_mask)

    return pl.pallas_call(
        kernel,
        out_shape=jax.ShapeDtypeStruct((B, H, S, dk), q.dtype),
        grid_spec=pltpu.PrefetchScalarGridSpec(
            num_scalar_prefetch=0, grid=(B, H),
            in_specs=in_specs,
            out_specs=pl.BlockSpec((None, None, S, dk), lambda b, h: (b, h, 0, 0))),
        compiler_params=_compiler_params("parallel", "parallel"),
    )(*inputs)


# ---------------------------------------------------------------------------
# EncoderBlock.forward
# ---------------------------------------------------------------------------
def encoder_block(x, src_mask, params, *, dropout_p=0.0, rng_key=None,
                  block_m=256, block_n=512, block_k=512):
    """x: (batch, seq_len, d_model); src_mask: (batch, 1, seq_len, seq_len)."""
    B, S, D = x.shape
    H = params["h"]
    dk = D // H
    R = B * S
    x2d = x.reshape(R, D)
    d_ff = params["w1"].shape[1]

    training = dropout_p > 0.0
    if training:
        k_attn, k_res1, k_ffn, k_res2 = jax.random.split(rng_key, 4)
        bits_attn = jax.random.bits(k_attn, (B, H, S, S), dtype=jnp.uint32)
        bits_res1 = jax.random.bits(k_res1, (R, D), dtype=jnp.uint32)
        bits_ffn = jax.random.bits(k_ffn, (R, d_ff), dtype=jnp.uint32)
        bits_res2 = jax.random.bits(k_res2, (R, D), dtype=jnp.uint32)
    else:
        bits_attn = bits_res1 = bits_ffn = bits_res2 = None

    # ---- residual connection 1: self-attention sublayer ---------------------
    # LN1 fused into the q/k/v projection matmuls (normed x never hits HBM).
    q2d = ln_linear(x2d, params["ln1_a"], params["ln1_b"], params["wq"],
                    params["bq"], block_m=block_m, block_n=block_n)
    k2d = ln_linear(x2d, params["ln1_a"], params["ln1_b"], params["wk"],
                    params["bk"], block_m=block_m, block_n=block_n)
    v2d = ln_linear(x2d, params["ln1_a"], params["ln1_b"], params["wv"],
                    params["bv"], block_m=block_m, block_n=block_n)

    def split_heads(t):
        return t.reshape(B, S, H, dk).transpose(0, 2, 1, 3)

    attn = mha_attention(split_heads(q2d), split_heads(k2d), split_heads(v2d),
                         src_mask, dropout_p=dropout_p, drop_bits=bits_attn)
    attn2d = attn.transpose(0, 2, 1, 3).reshape(R, D)

    # w_o projection with residual add + residual dropout fused in the epilogue
    x2d = linear(attn2d, params["wo"], params["bo"], residual=x2d,
                 dropout_p=dropout_p, drop_bits=bits_res1,
                 block_m=block_m, block_n=block_n, block_k=block_k)

    # ---- residual connection 2: feed-forward sublayer ------------------------
    # LN2 + linear_1 + ReLU + hidden dropout fused in one kernel
    h2d = ln_linear(x2d, params["ln2_a"], params["ln2_b"], params["w1"],
                    params["b1"], relu=True, dropout_p=dropout_p,
                    drop_bits=bits_ffn, block_m=block_m, block_n=block_n)
    # linear_2 with residual add + residual dropout fused in the epilogue
    x2d = linear(h2d, params["w2"], params["b2"], residual=x2d,
                 dropout_p=dropout_p, drop_bits=bits_res2,
                 block_m=block_m, block_n=block_n, block_k=block_k)

    return x2d.reshape(B, S, D)


# ---------------------------------------------------------------------------
# Pure-JAX reference (eval mode, dropout off) of the intended module forward.
# ---------------------------------------------------------------------------
def _reference_encoder_block(x, src_mask, p):
    def ln(t, a, b):
        m = jnp.mean(t, axis=-1, keepdims=True)
        s = jnp.std(t, axis=-1, keepdims=True, ddof=1)   # torch.std is unbiased
        return a * (t - m) / (s + EPS) + b

    B, S, D = x.shape
    H = p["h"]
    dk = D // H

    n1 = ln(x, p["ln1_a"], p["ln1_b"])
    q = (n1 @ p["wq"] + p["bq"]).reshape(B, S, H, dk).transpose(0, 2, 1, 3)
    k = (n1 @ p["wk"] + p["bk"]).reshape(B, S, H, dk).transpose(0, 2, 1, 3)
    v = (n1 @ p["wv"] + p["bv"]).reshape(B, S, H, dk).transpose(0, 2, 1, 3)
    s = (q @ jnp.swapaxes(k, -1, -2)) / math.sqrt(dk)
    s = jnp.where(src_mask == 0, -1e9, s)
    a = jax.nn.softmax(s, axis=-1)
    o = (a @ v).transpose(0, 2, 1, 3).reshape(B, S, D)
    x = x + (o @ p["wo"] + p["bo"])

    n2 = ln(x, p["ln2_a"], p["ln2_b"])
    h = jax.nn.relu(n2 @ p["w1"] + p["b1"])
    x = x + (h @ p["w2"] + p["b2"])
    return x


if __name__ == "__main__":
    batch, seq, d_model, d_ff, n_heads = 2, 8, 32, 64, 4
    dropout_p = 0.1

    root = jax.random.PRNGKey(0)
    kx, kp, kdrop = jax.random.split(root, 3)

    x = jax.random.normal(kx, (batch, seq, d_model), dtype=jnp.float32)

    ks = jax.random.split(kp, 12)

    def wmat(k, fan_in, fan_out):
        return jax.random.normal(k, (fan_in, fan_out), jnp.float32) / math.sqrt(fan_in)

    def bvec(k, n):
        return jax.random.normal(k, (n,), jnp.float32) * 0.05

    params = dict(
        h=n_heads,
        # LayerNormalization init: alpha = ones, bias = ones (exactly as the module)
        ln1_a=jnp.ones((d_model,), jnp.float32), ln1_b=jnp.ones((d_model,), jnp.float32),
        ln2_a=jnp.ones((d_model,), jnp.float32), ln2_b=jnp.ones((d_model,), jnp.float32),
        wq=wmat(ks[0], d_model, d_model), bq=bvec(ks[1], d_model),
        wk=wmat(ks[2], d_model, d_model), bk=bvec(ks[3], d_model),
        wv=wmat(ks[4], d_model, d_model), bv=bvec(ks[5], d_model),
        wo=wmat(ks[6], d_model, d_model), bo=bvec(ks[7], d_model),
        w1=wmat(ks[8], d_model, d_ff), b1=bvec(ks[9], d_ff),
        w2=wmat(ks[10], d_ff, d_model), b2=bvec(ks[11], d_model),
    )

    # src_mask (B, 1, S, S): mask the last key position of batch element 1
    src_mask = jnp.ones((batch, 1, seq, seq), dtype=jnp.float32)
    src_mask = src_mask.at[1, :, :, seq - 1].set(0.0)

    # ---- eval-mode run (dropout off): check against the pure-JAX reference ----
    out_eval = encoder_block(x, src_mask, params, dropout_p=0.0)
    jax.block_until_ready(out_eval)

    ref = _reference_encoder_block(x, src_mask, params)
    # loose-ish tolerance: MXU f32 matmul precision differs slightly from XLA's
    max_err = float(jnp.max(jnp.abs(out_eval - ref)))
    assert jnp.allclose(out_eval, ref, atol=2e-2, rtol=2e-2), max_err
    assert out_eval.shape == x.shape

    # ---- training-mode run (dropout active, host-generated uint32 streams) ----
    out_train = encoder_block(x, src_mask, params, dropout_p=dropout_p,
                              rng_key=kdrop)
    jax.block_until_ready(out_train)
    assert out_train.shape == x.shape
    assert bool(jnp.all(jnp.isfinite(out_train)))

    print("KERNEL_OK")
</pallas_src>

<mosaic_0001>
module attributes {stable_mosaic.version = 11 : i64} {
  func.func @_ln_linear_kernel(%arg0: i32, %arg1: i32, %arg2: memref<16x32xf32, #tpu.memory_space<vmem>>, %arg3: memref<1x32xf32, #tpu.memory_space<vmem>>, %arg4: memref<1x32xf32, #tpu.memory_space<vmem>>, %arg5: memref<32x32xf32, #tpu.memory_space<vmem>>, %arg6: memref<1x32xf32, #tpu.memory_space<vmem>>, %arg7: memref<16x32xf32, #tpu.memory_space<vmem>>) attributes {dimension_semantics = [#tpu.dimension_semantics<parallel>, #tpu.dimension_semantics<parallel>], iteration_bounds = array<i64: 1, 1>, scalar_prefetch = 0 : i64, scratch_operands = 0 : i64, tpu.core_type = #tpu.core_type<tc>, window_params = [{transform_indices = @transform_0, window_bounds = array<i64: 16, 32>}, {pipeline_mode = #tpu.pipeline_mode<synchronous>, transform_indices = @transform_1, window_bounds = array<i64: 1, 32>}, {pipeline_mode = #tpu.pipeline_mode<synchronous>, transform_indices = @transform_2, window_bounds = array<i64: 1, 32>}, {transform_indices = @transform_3, window_bounds = array<i64: 32, 32>}, {transform_indices = @transform_4, window_bounds = array<i64: 1, 32>}, {transform_indices = @transform_5, window_bounds = array<i64: 16, 32>}]} {
    %c0 = arith.constant 0 : index
    %c0_0 = arith.constant 0 : index
    %0 = vector.load %arg2[%c0, %c0_0] : memref<16x32xf32, #tpu.memory_space<vmem>>, vector<16x32xf32>
    %cst = arith.constant dense<0.000000e+00> : vector<16xf32>
    %1 = vector.multi_reduction <add>, %0, %cst [1] : vector<16x32xf32> to vector<16xf32>
    %2 = vector.shape_cast %1 : vector<16xf32> to vector<16x1xf32>
    %cst_1 = arith.constant 3.200000e+01 : f32
    %3 = vector.broadcast %cst_1 : f32 to vector<16x1xf32>
    %4 = arith.divf %2, %3 : vector<16x1xf32>
    %5 = vector.broadcast %4 : vector<16x1xf32> to vector<16x32xf32>
    %6 = arith.subf %0, %5 : vector<16x32xf32>
    %7 = arith.mulf %6, %6 : vector<16x32xf32>
    %cst_2 = arith.constant dense<0.000000e+00> : vector<16xf32>
    %8 = vector.multi_reduction <add>, %7, %cst_2 [1] : vector<16x32xf32> to vector<16xf32>
    %9 = vector.shape_cast %8 : vector<16xf32> to vector<16x1xf32>
    %cst_3 = arith.constant 0.0322580636 : f32
    %10 = vector.broadcast %cst_3 : f32 to vector<16x1xf32>
    %11 = arith.mulf %9, %10 : vector<16x1xf32>
    %12 = math.sqrt %11 : vector<16x1xf32>
    %cst_4 = arith.constant 9.99999997E-7 : f32
    %13 = vector.broadcast %cst_4 : f32 to vector<16x1xf32>
    %14 = arith.addf %12, %13 : vector<16x1xf32>
    %cst_5 = arith.constant 1.000000e+00 : f32
    %15 = vector.broadcast %cst_5 : f32 to vector<16x1xf32>
    %16 = arith.divf %15, %14 : vector<16x1xf32>
    %c0_6 = arith.constant 0 : index
    %c0_7 = arith.constant 0 : index
    %17 = vector.load %arg3[%c0_6, %c0_7] : memref<1x32xf32, #tpu.memory_space<vmem>>, vector<1x32xf32>
    %18 = vector.broadcast %16 : vector<16x1xf32> to vector<16x32xf32>
    %19 = arith.mulf %6, %18 : vector<16x32xf32>
    %20 = vector.broadcast %17 : vector<1x32xf32> to vector<16x32xf32>
    %21 = arith.mulf %20, %19 : vector<16x32xf32>
    %c0_8 = arith.constant 0 : index
    %c0_9 = arith.constant 0 : index
    %22 = vector.load %arg4[%c0_8, %c0_9] : memref<1x32xf32, #tpu.memory_space<vmem>>, vector<1x32xf32>
    %23 = vector.broadcast %22 : vector<1x32xf32> to vector<16x32xf32>
    %24 = arith.addf %21, %23 : vector<16x32xf32>
    %c0_10 = arith.constant 0 : index
    %c0_11 = arith.constant 0 : index
    %25 = vector.load %arg5[%c0_10, %c0_11] : memref<32x32xf32, #tpu.memory_space<vmem>>, vector<32x32xf32>
    %cst_12 = arith.constant dense<0.000000e+00> : vector<16x32xf32>
    %26 = tpu.matmul %24, %25, %cst_12 {dimension_numbers = #tpu.dot_dimension_numbers<[1], [0], [0], [1], [0, 0, 1, 1], [], []>} : vector<16x32xf32>, vector<32x32xf32>, vector<16x32xf32> -> vector<16x32xf32>
    %c0_13 = arith.constant 0 : index
    %c0_14 = arith.constant 0 : index
    %27 = vector.load %arg6[%c0_13, %c0_14] : memref<1x32xf32, #tpu.memory_space<vmem>>, vector<1x32xf32>
    %28 = vector.broadcast %27 : vector<1x32xf32> to vector<16x32xf32>
    %29 = arith.addf %26, %28 : vector<16x32xf32>
    %c0_15 = arith.constant 0 : index
    %c0_16 = arith.constant 0 : index
    %30 = vector.load %arg7[%c0_15, %c0_16] : memref<16x32xf32, #tpu.memory_space<vmem>>, vector<16x32xf32>
    tpu.vector_store %arg7[%c0_15, %c0_16], %29 {strides = array<i32>} : memref<16x32xf32, #tpu.memory_space<vmem>>, vector<16x32xf32>,
    return
  }
  func.func @transform_0(%arg0: i32, %arg1: i32) -> (i32, i32) {
    %c0_i32 = arith.constant 0 : i32
    %c0_i32_0 = arith.constant 0 : i32
    return %arg0, %c0_i32 : i32, i32
  }
  func.func @transform_1(%arg0: i32, %arg1: i32) -> (i32, i32) {
    %c0_i32 = arith.constant 0 : i32
    %c0_i32_0 = arith.constant 0 : i32
    %c0_i32_1 = arith.constant 0 : i32
    return %c0_i32, %c0_i32_0 : i32, i32
  }
  func.func @transform_2(%arg0: i32, %arg1: i32) -> (i32, i32) {
    %c0_i32 = arith.constant 0 : i32
    %c0_i32_0 = arith.constant 0 : i32
    %c0_i32_1 = arith.constant 0 : i32
    return %c0_i32, %c0_i32_0 : i32, i32
  }
  func.func @transform_3(%arg0: i32, %arg1: i32) -> (i32, i32) {
    %c0_i32 = arith.constant 0 : i32
    %c0_i32_0 = arith.constant 0 : i32
    return %c0_i32, %arg1 : i32, i32
  }
  func.func @transform_4(%arg0: i32, %arg1: i32) -> (i32, i32) {
    %c0_i32 = arith.constant 0 : i32
    %c0_i32_0 = arith.constant 0 : i32
    return %c0_i32, %arg1 : i32, i32
  }
  func.func @transform_5(%arg0: i32, %arg1: i32) -> (i32, i32) {
    %c0_i32 = arith.constant 0 : i32
    return %arg0, %arg1 : i32, i32
  }
}

</mosaic_0001>

<llo_original>
// kernel: tpu_custom_call.1
$region0: #{tpu_custom_call.1}
  #allocation0 [shape = 'u32[]', space=smem, size = 0x4, offset = 0x4, fixed_abs, tag = 'smem constant byte address 0x4 - core index']
  #allocation1 [shape = 'u32[144,128]{1,0:T(1,128)}', space=vmem, size = 0x12000, scoped, tag = 'internal scratch']
  %s0 = inlined_call_operand.hbm [shape: f32[16,32], index: 0, kind: input, shape index: {}]
  %s1 = inlined_call_operand.vmem [shape: f32[1,32], index: 1, kind: input, shape index: {}]
  %s2 = inlined_call_operand.vmem [shape: f32[1,32], index: 2, kind: input, shape index: {}]
  %s3 = inlined_call_operand.hbm [shape: f32[32,32], index: 3, kind: input, shape index: {}]
  %s4 = inlined_call_operand.vmem [shape: f32[1,32], index: 4, kind: input, shape index: {}]
  %s5 = inlined_call_operand.hbm [shape: f32[16,32], index: 5, kind: output, shape index: {}]
  %s6 = sld [smem:[#allocation0]]
  $region38: #{tpu_custom_call.1} parent=0
    _
  %s8 = ssub.s32 1, %s6
  %s9 = scalar_select 0, %s8, %s6
  $region1: #{tpu_custom_call.1} parent=0
    #allocation2 [shape = 'u8[8192]{0}', space=vmem, size = 0x2000, scoped, tag = 'input window, operand 0, single buffered']
    #allocation3 [shape = 's32[1]{0}', space=sflag, size = 0x4, scoped, tag = 'scoped memory for tpu_custom_call.1']
    #allocation4 [shape = 's32[1]{0}', space=sflag, size = 0x4, scoped, tag = 'scoped memory for tpu_custom_call.1']
    #allocation5 [shape = 'u8[16384]{0}', space=vmem, size = 0x4000, scoped, tag = 'input window, operand 3, single buffered']
    #allocation6 [shape = 's32[1]{0}', space=sflag, size = 0x4, scoped, tag = 'scoped memory for tpu_custom_call.1']
    #allocation7 [shape = 'u8[8192]{0}', space=vmem, size = 0x2000, scoped, tag = 'output window, operand 0, single buffered']
    %10 = vsyncpa [#allocation3], 0
    %11 = vsyncpa [#allocation6], 0
    %12 = vsyncpa [#allocation4], 0
    // Predicated region
    $region2: #{tpu_custom_call.1} parent=1 // pred_check
      _
    $region3: #{tpu_custom_call.1} parent=1 // pred_check_branch
      %14 = sbr.rel (0) target = $region5
    $region4: #{tpu_custom_call.1} parent=1 // pred_region
      %s16 = ssub.s32 256, 256
      %17 = vsyncadd [#allocation3], %s16
      %s18 = sshll.u32 [#allocation2], 4
      %s19 = int_to_ptr.vmem [resolvable:$true] %s18
      %24 = dma.hbm_to_vmem [thread:$0]  %s0, 256, %s19, [#allocation3], 128, 128, 8
    $region5: #{tpu_custom_call.1} parent=1 // pred_fallthru
      _
    // Predicated region
    $region6: #{tpu_custom_call.1} parent=1 // pred_check
      _
    $region7: #{tpu_custom_call.1} parent=1 // pred_check_branch
      %26 = sbr.rel (0) target = $region9
    $region8: #{tpu_custom_call.1} parent=1 // pred_region
      _
    $region9: #{tpu_custom_call.1} parent=1 // pred_fallthru
      _
    // Predicated region
    $region10: #{tpu_custom_call.1} parent=1 // pred_check
      _
    $region11: #{tpu_custom_call.1} parent=1 // pred_check_branch
      %28 = sbr.rel (0) target = $region13
    $region12: #{tpu_custom_call.1} parent=1 // pred_region
      _
    $region13: #{tpu_custom_call.1} parent=1 // pred_fallthru
      _
    // Predicated region
    $region14: #{tpu_custom_call.1} parent=1 // pred_check
      _
    $region15: #{tpu_custom_call.1} parent=1 // pred_check_branch
      %30 = sbr.rel (0) target = $region17
    $region16: #{tpu_custom_call.1} parent=1 // pred_region
      %s32 = ssub.s32 512, 512
      %33 = vsyncadd [#allocation6], %s32
      %s34 = sshll.u32 [#allocation5], 4
      %s35 = int_to_ptr.vmem [resolvable:$true] %s34
      %40 = dma.hbm_to_vmem [thread:$0]  %s3, 512, %s35, [#allocation6], 128, 128, 8
    $region17: #{tpu_custom_call.1} parent=1 // pred_fallthru
      _
    // Predicated region
    $region18: #{tpu_custom_call.1} parent=1 // pred_check
      _
    $region19: #{tpu_custom_call.1} parent=1 // pred_check_branch
      %42 = sbr.rel (0) target = $region21
    $region20: #{tpu_custom_call.1} parent=1 // pred_region
      _
    $region21: #{tpu_custom_call.1} parent=1 // pred_fallthru
      _
    // Predicated region
    $region22: #{tpu_custom_call.1} parent=1 // pred_check
      _
    $region23: #{tpu_custom_call.1} parent=1 // pred_check_branch
      %44 = sbr.rel (0) target = $region25
    $region24: #{tpu_custom_call.1} parent=1 // pred_region
      %45 = dma.done [#allocation3], 256
    $region25: #{tpu_custom_call.1} parent=1 // pred_fallthru
      _
    // Predicated region
    $region26: #{tpu_custom_call.1} parent=1 // pred_check
      _
    $region27: #{tpu_custom_call.1} parent=1 // pred_check_branch
      %47 = sbr.rel (0) target = $region29
    $region28: #{tpu_custom_call.1} parent=1 // pred_region
      %48 = dma.done [#allocation6], 512
    $region29: #{tpu_custom_call.1} parent=1 // pred_fallthru
      _
    %v49 = vld [vmem:[#allocation2] sm:$0xff]
    %v50 = vld [vmem:[#allocation2 + $0x8] sm:$0xff]
    %vm51 = vcmask 261120
    %v52 = vsel %vm51, %v49, 0.0
    %53 = vadd.xlane.f32.xlu0 %v52
    %v54 = vpop.xlane.xlu0 %53
    %v55 = vsel %vm51, %v50, 0.0
    %56 = vadd.xlane.f32.xlu0 %v55
    %v57 = vpop.xlane.xlu0 %56
    %v58 = vrcp.pop 32.0
    %v59 = vmul.f32 %v54, %v58
    %v60 = vmul.f32 %v57, %v58
    %v61 = vsub.f32 %v49, %v59
    %v62 = vsub.f32 %v50, %v60
    %v63 = vmul.f32 %v61, %v61
    %v64 = vmul.f32 %v62, %v62
    %v65 = vsel %vm51, %v63, 0.0
    %66 = vadd.xlane.f32.xlu0 %v65
    %v67 = vpop.xlane.xlu0 %66
    %v68 = vsel %vm51, %v64, 0.0
    %69 = vadd.xlane.f32.xlu0 %v68
    %v70 = vpop.xlane.xlu0 %69
    %v71 = vmul.f32 %v67, 0.032258064
    %v72 = vmul.f32 %v70, 0.032258064
    %v73 = vrsqrt.pop %v71
    %v74 = vmul.f32 %v71, %v73
    %vm75 = vcmp.eq.f32.partialorder %v71, inf
    %v76 = vsel %vm75, %v71, %v74
    %vm77 = vcmp.eq.f32.partialorder %v71, 0.0
    %v78 = vand.u32 %v71, 2147483648
    %v79 = vsel %vm77, %v78, %v76
    %v80 = vrsqrt.pop %v72
    %v81 = vmul.f32 %v72, %v80
    %vm82 = vcmp.eq.f32.partialorder %v72, inf
    %v83 = vsel %vm82, %v72, %v81
    %vm84 = vcmp.eq.f32.partialorder %v72, 0.0
    %v85 = vand.u32 %v72, 2147483648
    %v86 = vsel %vm84, %v85, %v83
    %v87 = vadd.f32 %v79, 1e-06
    %v88 = vadd.f32 %v86, 1e-06
    %v89 = vrcp.pop %v87
    %v90 = vmul.f32 1.0, %v89
    %v91 = vrcp.pop %v88
    %v92 = vmul.f32 1.0, %v91
    %v93 = vld [vmem:[%s1] sm:$0x1]
    %v94 = vmul.f32 %v61, %v90
    %v95 = vmul.f32 %v62, %v92
    %v97 = vlaneseq
    %v98 = vshrl.u32 %v97, 7
    %v99 = vsub.s32 0, %v98
    %v100 = vrot.slane %v93, %v99
    %v102 = vmul.f32 %v100, %v94
    %v103 = vmul.f32 %v100, %v95
    %v104 = vld [vmem:[%s2] sm:$0x1]
    %v106 = vlaneseq
    %v107 = vshrl.u32 %v106, 7
    %v108 = vsub.s32 0, %v107
    %v109 = vrot.slane %v104, %v108
    %v111 = vadd.f32 %v102, %v109
    %v112 = vadd.f32 %v103, %v109
    %v113 = vld [vmem:[#allocation5] sm:$0xff]
    %v114 = vld [vmem:[#allocation5 + $0x8] sm:$0xff]
    %v115 = vld [vmem:[#allocation5 + $0x10] sm:$0xff]
    %v116 = vld [vmem:[#allocation5 + $0x18] sm:$0xff]
    %v117 = vld [vmem:[%s4] sm:$0x1]
    %v119 = vlaneseq
    %v120 = vshrl.u32 %v119, 7
    %v121 = vsub.s32 0, %v120
    %v122 = vrot.slane %v117, %v121
    %v125 = vsel %vm51, %v111, 0
    %v128 = vsel %vm51, %v112, 0
    %130 = vmatprep.subr.mxu0 0.0
    %131 = vmatpush1.msra.mxu0 0.0
    %132 = vmatprep.subr.mxu0 0.0
    %133 = vmatpush1.msra.mxu0 0.0
    %134 = vmatprep.subr.mxu0 0.0
    %135 = vmatpush1.msra.mxu0 0.0
    %136 = vmatprep.subr.mxu0 0.0
    %137 = vmatpush1.msra.mxu0 0.0
    %138 = vmatprep.subr.mxu0 0.0
    %139 = vmatpush1.msra.mxu0 0.0
    %140 = vmatprep.subr.mxu0 0.0
    %141 = vmatpush1.msra.mxu0 0.0
    %142 = vmatprep.subr.mxu0 0.0
    %143 = vmatpush1.msra.mxu0 0.0
    %144 = vmatprep.subr.mxu0 0.0
    %145 = vmatpush1.msra.mxu0 0.0
    %146 = vmatprep.subr.mxu0 0.0
    %147 = vmatpush1.msra.mxu0 0.0
    %148 = vmatprep.subr.mxu0 0.0
    %149 = vmatpush1.msra.mxu0 0.0
    %150 = vmatprep.subr.mxu0 0.0
    %151 = vmatpush1.msra.mxu0 0.0
    %152 = vmatprep.subr.mxu0 0.0
    %153 = vmatpush1.msra.mxu0 0.0
    %154 = vmatprep.subr.mxu0 0.0
    %155 = vmatpush1.msra.mxu0 %v116
    %156 = vmatprep.subr.mxu0 0.0
    %157 = vmatpush1.msra.mxu0 %v115
    %158 = vmatprep.subr.mxu0 0.0
    %159 = vmatpush1.msra.mxu0 %v114
    %160 = vmatprep.subr.mxu0 0.0
    %161 = vmatpush1.msra.mxu0 %v113
    %162 = vmatprep.subr.mxu0 0.0
    %163 = vmatpush2.msra.mxu0 0.0
    %164 = vmatprep.subr.mxu0 0.0
    %165 = vmatpush2.msra.mxu0 0.0
    %166 = vmatprep.subr.mxu0 0.0
    %167 = vmatpush2.msra.mxu0 0.0
    %168 = vmatprep.subr.mxu0 0.0
    %169 = vmatpush2.msra.mxu0 0.0
    %170 = vmatprep.subr.mxu0 0.0
    %171 = vmatpush2.msra.mxu0 0.0
    %172 = vmatprep.subr.mxu0 0.0
    %173 = vmatpush2.msra.mxu0 0.0
    %174 = vmatprep.subr.mxu0 0.0
    %175 = vmatpush2.msra.mxu0 0.0
    %176 = vmatprep.subr.mxu0 0.0
    %177 = vmatpush2.msra.mxu0 0.0
    %178 = vmatprep.subr.mxu0 0.0
    %179 = vmatpush2.msra.mxu0 0.0
    %180 = vmatprep.subr.mxu0 0.0
    %181 = vmatpush2.msra.mxu0 0.0
    %182 = vmatprep.subr.mxu0 0.0
    %183 = vmatpush2.msra.mxu0 0.0
    %184 = vmatprep.subr.mxu0 0.0
    %185 = vmatpush2.msra.mxu0 0.0
    %186 = vmatprep.subr.mxu0 0.0
    %187 = vmatpush2.msra.mxu0 0.0
    %188 = vmatprep.subr.mxu0 0.0
    %189 = vmatpush2.msra.mxu0 0.0
    %190 = vmatprep.subr.mxu0 0.0
    %191 = vmatpush2.msra.mxu0 0.0
    %192 = vmatprep.subr.mxu0 0.0
    %193 = vmatpush2.msra.mxu0 0.0
    %194 = vmatprep.mubr.f32.mxu0 0.0
    %195 = vmatmul.mubr.f32.gmra.mxu0 %v125
    %v196 = vpop.f32.mrf.mxu0
    %v197 = vadd.f32 %v122, %v196
    %v198 = vpop.f32.mrf.mxu0
    %199 = vmatprep.mubr.f32.mxu0 0.0
    %200 = vmatmul.mubr.f32.gmra.mxu0 %v128
    %v201 = vpop.f32.mrf.mxu0
    %v202 = vadd.f32 %v122, %v201
    %v203 = vpop.f32.mrf.mxu0
    %204 = vdwg.mxu0
    %205 = vst.msk [vmem:[#allocation7] sm:$0xff] %vm51, %v197
    %206 = vst.msk [vmem:[#allocation7 + $0x8] sm:$0xff] %vm51, %v202
    // Predicated region
    $region30: #{tpu_custom_call.1} parent=1 // pred_check
      _
    $region31: #{tpu_custom_call.1} parent=1 // pred_check_branch
      %208 = sbr.rel (0) target = $region33
    $region32: #{tpu_custom_call.1} parent=1 // pred_region
      %s210 = ssub.s32 256, 256
      %211 = vsyncadd [#allocation4], %s210
      %s212 = sshll.u32 [#allocation7], 4
      %s213 = int_to_ptr.vmem [resolvable:$true] %s212
      %218 = dma.vmem_to_hbm [thread:$0]  %s213, 256, %s5, [#allocation4], 128, 128, 8
    $region33: #{tpu_custom_call.1} parent=1 // pred_fallthru
      _
    // Predicated region
    $region34: #{tpu_custom_call.1} parent=1 // pred_check
      _
    $region35: #{tpu_custom_call.1} parent=1 // pred_check_branch
      %220 = sbr.rel (0) target = $region37
    $region36: #{tpu_custom_call.1} parent=1 // pred_region
      %221 = dma.done [#allocation4], 256
    $region37: #{tpu_custom_call.1} parent=1 // pred_fallthru
      _
    %222 = vsyncpa [#allocation3], 1
    %223 = vsyncpa [#allocation6], 1
    %224 = vsyncpa [#allocation4], 1

</llo_original>
